<compile_context>
chip_gen: v6e
topology: v6e:2x2x1
jax: 0.10.0
libtpu: 0.0.40
codegen_flags: <defaults>
</compile_context>

<pallas_src>
import math

import jax
import jax.numpy as jnp
from jax.experimental import pallas as pl
from jax.experimental.pallas import tpu as pltpu


# --------------------------------------------------------------------------
# VMEM budgeting
# --------------------------------------------------------------------------
def _vmem_budget():
    """Returns (working-set budget, compiler vmem limit) in bytes."""
    phys = 128 * 1024 * 1024
    try:
        info = pltpu.get_tpu_info()
        phys = int(getattr(info, "vmem_capacity_bytes", phys))
    except Exception:
        phys = 64 * 1024 * 1024            # conservative (v7x-sized) fallback
    # ~96 MiB on v5e/v6e (128 MiB physical), ~48 MiB on v7x (64 MiB physical).
    vmem_limit = min(phys - phys // 4, 100 * 1024 * 1024)
    budget = vmem_limit - 8 * 1024 * 1024  # headroom for compiler scratch
    return budget, vmem_limit


def _pick_row_tile(rows, per_row_bytes, fixed_bytes, budget, cap=1024):
    """Row-tile size: full extent if it fits (always layout-legal), else a
    multiple of 8 shrunk to the VMEM budget (trailing partial block is fine)."""
    if rows <= cap and rows * per_row_bytes + fixed_bytes <= budget:
        return rows
    if rows < 8:
        return rows
    t = max(8, min((cap // 8) * 8, (rows // 8) * 8))
    while t > 8 and t * per_row_bytes + fixed_bytes > budget:
        t = max(8, ((t // 2) // 8) * 8)
    return t


# --------------------------------------------------------------------------
# Kernels
# --------------------------------------------------------------------------
def _matmul_bias_kernel(p_ref, w_ref, b_ref, o_ref):
    # p_ref: (TR, K) patches, w_ref: (K, TE) weight, b_ref: (1, TE) f32 bias.
    acc = jnp.dot(p_ref[...], w_ref[...], preferred_element_type=jnp.float32)
    o_ref[...] = (acc + b_ref[...]).astype(o_ref.dtype)


def _make_fused_kernel(unroll_channels=16):
    def kernel(x_ref, w_ref, b_ref, o_ref):
        # x_ref: (1, C, TL, P)  activations (native layout, no im2col copy)
        # w_ref: (C, P, E)      VMEM-resident weight
        # b_ref: (1, E)         f32 bias
        # o_ref: (1, TL, E)
        c_total = x_ref.shape[1]
        acc0 = jnp.zeros(o_ref.shape[1:], jnp.float32)
        if c_total <= unroll_channels:          # static unroll for small C
            acc = acc0
            for c in range(c_total):
                acc = acc + jnp.dot(x_ref[0, c], w_ref[c],
                                    preferred_element_type=jnp.float32)
        else:                                   # rolled loop for large C
            def body(c, a):
                return a + jnp.dot(x_ref[0, c], w_ref[c],
                                   preferred_element_type=jnp.float32)
            acc = jax.lax.fori_loop(0, c_total, body, acc0)
        o_ref[0] = (acc + b_ref[...]).astype(o_ref.dtype)
    return kernel


# --------------------------------------------------------------------------
# Forward wrapper
# --------------------------------------------------------------------------
def patch_embedding_forward(x, weight, bias, *, stride, padding=0,
                            compute_dtype=None, channels_last=False):
    """Conv1d forward identical to nn.Conv1d(C, E, patch, stride, padding).

    x:      (N, C, L);  weight: (E, C, P);  bias: (E,)
    returns (N, E, L_out)    (or (N, L_out, E) if channels_last=True).

    compute_dtype=jnp.bfloat16 halves the streamed activation/weight bytes
    (f32 MXU accumulation, f32 bias) -- recommended on v6e/v7x when the
    consumer tolerates it; default keeps the input dtype (exact for f32).
    """
    N, C, L = x.shape
    E, Cw, P = weight.shape
    assert C == Cw
    out_dtype = x.dtype
    if compute_dtype is None:
        compute_dtype = x.dtype
    comp_bytes = jnp.dtype(compute_dtype).itemsize
    out_bytes = jnp.dtype(out_dtype).itemsize

    if padding > 0:
        x = jnp.pad(x, ((0, 0), (0, 0), (padding, padding)))
    Lp = L + 2 * padding
    L_out = (Lp - P) // stride + 1
    K = C * P
    R = N * L_out

    budget, vmem_limit = _vmem_budget()
    bias_f32 = bias.reshape(1, E).astype(jnp.float32)
    cost = pl.CostEstimate(
        flops=2 * R * K * E, transcendentals=0,
        bytes_accessed=(R * K * comp_bytes + K * E * comp_bytes
                        + R * E * out_bytes + E * 4))
    cparams = pltpu.CompilerParams(
        dimension_semantics=("parallel", "parallel"),
        vmem_limit_bytes=vmem_limit)

    weight_resident_bytes = 2 * K * E * comp_bytes   # (conservative dbl-buffer)
    fused_ok = (stride == P) and (weight_resident_bytes <= budget // 2)

    if fused_ok:
        # ------- fused im2col: activations read once, native layout ---------
        x4 = x[:, :, :L_out * P].reshape(N, C, L_out, P).astype(compute_dtype)
        w_f = jnp.transpose(weight, (1, 2, 0)).astype(compute_dtype)   # (C,P,E)

        per_row = 2 * C * P * comp_bytes + 2 * E * out_bytes + 2 * E * 4
        fixed = weight_resident_bytes + 2 * E * 4
        TL = _pick_row_tile(L_out, per_row, fixed, budget)
        grid = (N, pl.cdiv(L_out, TL))
        # TODO(synk): for tiny L_out with huge N, flatten (N, L_out) into one
        # row axis to amortize per-grid-step overhead.

        out = pl.pallas_call(
            _make_fused_kernel(),
            out_shape=jax.ShapeDtypeStruct((N, L_out, E), out_dtype),
            grid=grid,
            in_specs=[
                pl.BlockSpec((1, C, TL, P), lambda n, l: (n, 0, l, 0)),
                pl.BlockSpec((C, P, E), lambda n, l: (0, 0, 0)),  # resident
                pl.BlockSpec((1, E), lambda n, l: (0, 0)),        # resident
            ],
            out_specs=pl.BlockSpec((1, TL, E), lambda n, l: (n, l, 0)),
            compiler_params=cparams,
            cost_estimate=cost,
        )(x4, w_f, bias_f32)
    else:
        # ------- generic path: im2col in JAX + tiled matmul kernel ----------
        # TODO(synk): fuse the strided/overlapping gather into the kernel via
        # an index_map over L to remove this extra HBM pass too.
        if stride == P:
            xs = x[:, :, :L_out * P].reshape(N, C, L_out, P)
        else:
            idx = jnp.arange(L_out)[:, None] * stride + jnp.arange(P)[None, :]
            xs = x[:, :, idx]                                  # (N, C, L_out, P)
        patches = jnp.transpose(xs, (0, 2, 1, 3)).reshape(R, K).astype(compute_dtype)
        w_mat = weight.reshape(E, K).T.astype(compute_dtype)   # (K, E)

        if weight_resident_bytes <= budget // 2:
            TE, n_eb = E, 1                       # whole weight VMEM-resident
        else:
            TE = max(128, (((budget // 2) // (2 * K * comp_bytes)) // 128) * 128)
            n_eb = pl.cdiv(E, TE)
        per_row = 2 * K * comp_bytes + 2 * TE * out_bytes + 2 * TE * 4
        fixed = 2 * K * TE * comp_bytes + 2 * TE * 4
        TR = _pick_row_tile(R, per_row, fixed, budget)
        grid = (pl.cdiv(R, TR), n_eb)
        # TODO(synk): for very large K on v7x, add a K grid axis ("arbitrary")
        # with an f32 accumulator instead of shrinking TR/TE.

        out = pl.pallas_call(
            _matmul_bias_kernel,
            out_shape=jax.ShapeDtypeStruct((R, E), out_dtype),
            grid=grid,
            in_specs=[
                pl.BlockSpec((TR, K), lambda i, j: (i, 0)),    # true (unpadded) K
                pl.BlockSpec((K, TE), lambda i, j: (0, j)),
                pl.BlockSpec((1, TE), lambda i, j: (0, j)),
            ],
            out_specs=pl.BlockSpec((TR, TE), lambda i, j: (i, j)),
            compiler_params=cparams,
            cost_estimate=cost,
        )(patches, w_mat, bias_f32)
        out = out.reshape(N, L_out, E)

    if channels_last:
        return out                                # (N, L_out, E): skips transpose
    # TODO(synk): emit (N, E, L_out) directly from the kernel (on-chip tile
    # transpose, 128-multiple row tiles) to remove this output HBM pass.
    return jnp.transpose(out, (0, 2, 1))          # (N, E, L_out): matches PyTorch


def init_patch_embedding_params(key, in_channels, embed_dim, patch_size):
    """Deterministic Conv1d param init (PyTorch-style uniform bounds)."""
    kw, kb = jax.random.split(key)
    fan_in = in_channels * patch_size
    bound = 1.0 / math.sqrt(fan_in)
    weight = jax.random.uniform(
        kw, (embed_dim, in_channels, patch_size), jnp.float32, -bound, bound)
    bias = jax.random.uniform(kb, (embed_dim,), jnp.float32, -bound, bound)
    return weight, bias


if __name__ == "__main__":
    batch, in_channels, length = 2, 4, 16
    embed_dim, patch_size = 32, 4

    key = jax.random.PRNGKey(0)
    kx, kp = jax.random.split(key)
    x = jax.random.normal(kx, (batch, in_channels, length), jnp.float32)
    weight, bias = init_patch_embedding_params(kp, in_channels, embed_dim, patch_size)

    def conv_ref(x, w, b, stride, padding):
        out = jax.lax.conv_general_dilated(
            x, w, window_strides=(stride,), padding=[(padding, padding)],
            dimension_numbers=("NCH", "OIH", "NCH"))
        return out + b.reshape(1, -1, 1)

    # 1) Non-overlapping patches (stride == patch): fused-im2col kernel path.
    ref = jax.block_until_ready(conv_ref(x, weight, bias, patch_size, 0))
    out = jax.block_until_ready(
        patch_embedding_forward(x, weight, bias, stride=patch_size, padding=0))
    L_out = (length - patch_size) // patch_size + 1
    assert out.shape == ref.shape == (batch, embed_dim, L_out)
    assert jnp.allclose(out, ref, atol=1e-5, rtol=1e-5)

    # 2) Same path, bf16 streaming with f32 accumulation (v6e/v7x-preferred).
    out_bf16 = jax.block_until_ready(
        patch_embedding_forward(x, weight, bias, stride=patch_size, padding=0,
                                compute_dtype=jnp.bfloat16))
    assert out_bf16.shape == ref.shape
    assert jnp.allclose(out_bf16, ref, atol=5e-2, rtol=5e-2)

    # 3) Overlapping patches (stride < patch, padding): generic matmul path.
    ref2 = jax.block_until_ready(conv_ref(x, weight, bias, 2, 1))
    out2 = jax.block_until_ready(
        patch_embedding_forward(x, weight, bias, stride=2, padding=1))
    assert out2.shape == ref2.shape
    assert jnp.allclose(out2, ref2, atol=1e-5, rtol=1e-5)

    print("KERNEL_OK")
</pallas_src>

<mosaic_0001>
module attributes {stable_mosaic.version = 11 : i64} {
  func.func @kernel(%arg0: i32, %arg1: i32, %arg2: memref<1x4x4x4xf32, #tpu.memory_space<vmem>>, %arg3: memref<4x4x32xf32, #tpu.memory_space<vmem>>, %arg4: memref<1x32xf32, #tpu.memory_space<vmem>>, %arg5: memref<1x4x32xf32, #tpu.memory_space<vmem>>) attributes {dimension_semantics = [#tpu.dimension_semantics<parallel>, #tpu.dimension_semantics<parallel>], iteration_bounds = array<i64: 2, 1>, scalar_prefetch = 0 : i64, scratch_operands = 0 : i64, tpu.core_type = #tpu.core_type<tc>, window_params = [{transform_indices = @transform_0, window_bounds = array<i64: 1, 4, 4, 4>}, {pipeline_mode = #tpu.pipeline_mode<synchronous>, transform_indices = @transform_1, window_bounds = array<i64: 4, 4, 32>}, {pipeline_mode = #tpu.pipeline_mode<synchronous>, transform_indices = @transform_2, window_bounds = array<i64: 1, 32>}, {transform_indices = @transform_3, window_bounds = array<i64: 1, 4, 32>}]} {
    %cst = arith.constant 0.000000e+00 : f32
    %0 = vector.broadcast %cst : f32 to vector<4x32xf32>
    %c0 = arith.constant 0 : index
    %c0_0 = arith.constant 0 : index
    %c0_1 = arith.constant 0 : index
    %c0_2 = arith.constant 0 : index
    %1 = vector.load %arg2[%c0, %c0_0, %c0_1, %c0_2] : memref<1x4x4x4xf32, #tpu.memory_space<vmem>>, vector<1x1x4x4xf32>
    %2 = vector.shape_cast %1 : vector<1x1x4x4xf32> to vector<4x4xf32>
    %c0_3 = arith.constant 0 : index
    %c0_4 = arith.constant 0 : index
    %c0_5 = arith.constant 0 : index
    %3 = vector.load %arg3[%c0_3, %c0_4, %c0_5] : memref<4x4x32xf32, #tpu.memory_space<vmem>>, vector<1x4x32xf32>
    %4 = vector.shape_cast %3 : vector<1x4x32xf32> to vector<4x32xf32>
    %cst_6 = arith.constant dense<0.000000e+00> : vector<4x32xf32>
    %5 = tpu.matmul %2, %4, %cst_6 {dimension_numbers = #tpu.dot_dimension_numbers<[1], [0], [0], [1], [0, 0, 1, 1], [], []>} : vector<4x4xf32>, vector<4x32xf32>, vector<4x32xf32> -> vector<4x32xf32>
    %6 = arith.addf %0, %5 : vector<4x32xf32>
    %c0_7 = arith.constant 0 : index
    %c1 = arith.constant 1 : index
    %c0_8 = arith.constant 0 : index
    %c0_9 = arith.constant 0 : index
    %7 = vector.load %arg2[%c0_7, %c1, %c0_8, %c0_9] : memref<1x4x4x4xf32, #tpu.memory_space<vmem>>, vector<1x1x4x4xf32>
    %8 = vector.shape_cast %7 : vector<1x1x4x4xf32> to vector<4x4xf32>
    %c1_10 = arith.constant 1 : index
    %c0_11 = arith.constant 0 : index
    %c0_12 = arith.constant 0 : index
    %9 = vector.load %arg3[%c1_10, %c0_11, %c0_12] : memref<4x4x32xf32, #tpu.memory_space<vmem>>, vector<1x4x32xf32>
    %10 = vector.shape_cast %9 : vector<1x4x32xf32> to vector<4x32xf32>
    %cst_13 = arith.constant dense<0.000000e+00> : vector<4x32xf32>
    %11 = tpu.matmul %8, %10, %cst_13 {dimension_numbers = #tpu.dot_dimension_numbers<[1], [0], [0], [1], [0, 0, 1, 1], [], []>} : vector<4x4xf32>, vector<4x32xf32>, vector<4x32xf32> -> vector<4x32xf32>
    %12 = arith.addf %6, %11 : vector<4x32xf32>
    %c0_14 = arith.constant 0 : index
    %c2 = arith.constant 2 : index
    %c0_15 = arith.constant 0 : index
    %c0_16 = arith.constant 0 : index
    %13 = vector.load %arg2[%c0_14, %c2, %c0_15, %c0_16] : memref<1x4x4x4xf32, #tpu.memory_space<vmem>>, vector<1x1x4x4xf32>
    %14 = vector.shape_cast %13 : vector<1x1x4x4xf32> to vector<4x4xf32>
    %c2_17 = arith.constant 2 : index
    %c0_18 = arith.constant 0 : index
    %c0_19 = arith.constant 0 : index
    %15 = vector.load %arg3[%c2_17, %c0_18, %c0_19] : memref<4x4x32xf32, #tpu.memory_space<vmem>>, vector<1x4x32xf32>
    %16 = vector.shape_cast %15 : vector<1x4x32xf32> to vector<4x32xf32>
    %cst_20 = arith.constant dense<0.000000e+00> : vector<4x32xf32>
    %17 = tpu.matmul %14, %16, %cst_20 {dimension_numbers = #tpu.dot_dimension_numbers<[1], [0], [0], [1], [0, 0, 1, 1], [], []>} : vector<4x4xf32>, vector<4x32xf32>, vector<4x32xf32> -> vector<4x32xf32>
    %18 = arith.addf %12, %17 : vector<4x32xf32>
    %c0_21 = arith.constant 0 : index
    %c3 = arith.constant 3 : index
    %c0_22 = arith.constant 0 : index
    %c0_23 = arith.constant 0 : index
    %19 = vector.load %arg2[%c0_21, %c3, %c0_22, %c0_23] : memref<1x4x4x4xf32, #tpu.memory_space<vmem>>, vector<1x1x4x4xf32>
    %20 = vector.shape_cast %19 : vector<1x1x4x4xf32> to vector<4x4xf32>
    %c3_24 = arith.constant 3 : index
    %c0_25 = arith.constant 0 : index
    %c0_26 = arith.constant 0 : index
    %21 = vector.load %arg3[%c3_24, %c0_25, %c0_26] : memref<4x4x32xf32, #tpu.memory_space<vmem>>, vector<1x4x32xf32>
    %22 = vector.shape_cast %21 : vector<1x4x32xf32> to vector<4x32xf32>
    %cst_27 = arith.constant dense<0.000000e+00> : vector<4x32xf32>
    %23 = tpu.matmul %20, %22, %cst_27 {dimension_numbers = #tpu.dot_dimension_numbers<[1], [0], [0], [1], [0, 0, 1, 1], [], []>} : vector<4x4xf32>, vector<4x32xf32>, vector<4x32xf32> -> vector<4x32xf32>
    %24 = arith.addf %18, %23 : vector<4x32xf32>
    %c0_28 = arith.constant 0 : index
    %c0_29 = arith.constant 0 : index
    %25 = vector.load %arg4[%c0_28, %c0_29] : memref<1x32xf32, #tpu.memory_space<vmem>>, vector<1x32xf32>
    %26 = vector.broadcast %25 : vector<1x32xf32> to vector<4x32xf32>
    %27 = arith.addf %24, %26 : vector<4x32xf32>
    %c0_30 = arith.constant 0 : index
    %c0_31 = arith.constant 0 : index
    %c0_32 = arith.constant 0 : index
    %28 = vector.load %arg5[%c0_30, %c0_31, %c0_32] : memref<1x4x32xf32, #tpu.memory_space<vmem>>, vector<1x4x32xf32>
    %29 = vector.shape_cast %28 : vector<1x4x32xf32> to vector<4x32xf32>
    %30 = vector.shape_cast %27 : vector<4x32xf32> to vector<1x4x32xf32>
    tpu.vector_store %arg5[%c0_30, %c0_31, %c0_32], %30 {strides = array<i32>} : memref<1x4x32xf32, #tpu.memory_space<vmem>>, vector<1x4x32xf32>,
    return
  }
  func.func @transform_0(%arg0: i32, %arg1: i32) -> (i32, i32, i32, i32) {
    %c0_i32 = arith.constant 0 : i32
    %c0_i32_0 = arith.constant 0 : i32
    %c0_i32_1 = arith.constant 0 : i32
    return %arg0, %c0_i32, %arg1, %c0_i32_0 : i32, i32, i32, i32
  }
  func.func @transform_1(%arg0: i32, %arg1: i32) -> (i32, i32, i32) {
    %c0_i32 = arith.constant 0 : i32
    %c0_i32_0 = arith.constant 0 : i32
    %c0_i32_1 = arith.constant 0 : i32
    %c0_i32_2 = arith.constant 0 : i32
    return %c0_i32, %c0_i32_0, %c0_i32_1 : i32, i32, i32
  }
  func.func @transform_2(%arg0: i32, %arg1: i32) -> (i32, i32) {
    %c0_i32 = arith.constant 0 : i32
    %c0_i32_0 = arith.constant 0 : i32
    %c0_i32_1 = arith.constant 0 : i32
    return %c0_i32, %c0_i32_0 : i32, i32
  }
  func.func @transform_3(%arg0: i32, %arg1: i32) -> (i32, i32, i32) {
    %c0_i32 = arith.constant 0 : i32
    %c0_i32_0 = arith.constant 0 : i32
    return %arg0, %arg1, %c0_i32 : i32, i32, i32
  }
}

</mosaic_0001>

<llo_original>
// kernel: tpu_custom_call.1
$region0: #{tpu_custom_call.1}
  #allocation0 [shape = 'u32[]', space=smem, size = 0x4, offset = 0x4, fixed_abs, tag = 'smem constant byte address 0x4 - core index']
  #allocation1 [shape = 'u32[144,128]{1,0:T(1,128)}', space=vmem, size = 0x12000, scoped, tag = 'internal scratch']
  %s0 = inlined_call_operand.hbm [shape: f32[2,4,4,4], index: 0, kind: input, shape index: {}]
  %s1 = inlined_call_operand.hbm [shape: f32[4,4,32], index: 1, kind: input, shape index: {}]
  %s2 = inlined_call_operand.vmem [shape: f32[1,32], index: 2, kind: input, shape index: {}]
  %s3 = inlined_call_operand.hbm [shape: f32[2,4,32], index: 3, kind: output, shape index: {}]
  %s4 = sld [smem:[#allocation0]]
  $region53: #{tpu_custom_call.1} parent=0
    _
  %s6 = ssub.s32 1, %s4
  %s7 = scalar_select 0, %s6, %s4
  $region1: #{tpu_custom_call.1} parent=0
    #allocation2 [shape = 'u8[16384]{0}', space=vmem, size = 0x4000, scoped, tag = 'input window, operand 0']
    #allocation3 [shape = 's32[2]{0}', space=sflag, size = 0x8, scoped, tag = 'scoped memory for tpu_custom_call.1']
    #allocation4 [shape = 's32[2]{0}', space=sflag, size = 0x8, scoped, tag = 'scoped memory for tpu_custom_call.1']
    #allocation5 [shape = 'u8[8192]{0}', space=vmem, size = 0x2000, scoped, tag = 'input window, operand 1, single buffered']
    #allocation6 [shape = 's32[1]{0}', space=sflag, size = 0x4, scoped, tag = 'scoped memory for tpu_custom_call.1']
    #allocation7 [shape = 'u8[4096]{0}', space=vmem, size = 0x1000, scoped, tag = 'output window, operand 0']
    %8 = vsyncpa [#allocation3], 0
    %s9 = scalar_lea.sflag [#allocation3], 1
    %10 = vsyncpa %s9, 0
    %11 = vsyncpa [#allocation6], 0
    %12 = vsyncpa [#allocation4], 0
    %s13 = scalar_lea.sflag [#allocation4], 1
    %14 = vsyncpa %s13, 0
    loop: start=0, step=1, limit=4
    $region2: #{tpu_custom_call.1} parent=1 // loop_pre_header
      _
    $region3: #{tpu_custom_call.1} parent=1 // loop_header
      %s16 = sphi 0, %s20
      %p17 = scmp.ge.s32.totalorder %s16, 4
      %s23 = sphi 0, %s35
      %s24 = sphi 0, %s31
      %s25 = sphi 0, %s23
      %s26 = sphi 0, %s24
      %s27 = sphi 0, %s25
      %s28 = sphi 0, %s26
      %s40 = sphi 0, %s42
      %s43 = sphi 0, %s40
      %s44 = sphi 0, %s43
      %s60 = sphi 0, %s44
      %s64 = sphi 0, %s64
      %s66 = sphi 0, %s64
      %s67 = sphi 0, %s66
      %s81 = sphi 0, %s67
      %s85 = sphi 0, %s85
      %s87 = sphi 0, %s85
      %s88 = sphi 0, %s87
      %s102 = sphi 0, %s88
      %s110 = sphi 0, %s112
      %s113 = sphi 0, %s110
      %s114 = sphi 0, %s113
      %s130 = sphi 0, %s114
    $region4: #{tpu_custom_call.1} parent=1 // loop_header_branch
      %19 = sbr.rel (%p17) target = $region8
    $region5: #{tpu_custom_call.1} parent=1 // loop_body
      %s21 = ssub.s32 %s16, 1
      %s22 = ssub.s32 %s16, 2
      %s29 = sadd.s32 1, %s24
      %p30 = scmp.ge.s32.totalorder %s29, 1
      %s31 = scalar_select %p30, 0, %s29
      %s32 = sadd.s32 1, %s23
      %s33 = scalar_select %p30, %s32, %s23
      %p34 = scmp.ge.s32.totalorder %s33, 2
      %s35 = scalar_select %p34, 0, %s33
      %s36 = ssub.s32 %s23, %s35
      %s37 = ssub.s32 %s24, %s31
      %s38 = sor.u32 %s36, %s37
      %p39 = scmp.eq.s32.totalorder %s38, 0
      %s41 = sadd.s32 %s40, 1
      %s42 = scalar_select %p39, %s40, %s41
      %p45 = pneg %p39
      %p46 = scmp.eq.s32.totalorder %s16, 1
      %p47 = por %p45, %p46
      %p48 = scmp.ne.s32.totalorder %s40, %s43
      %p49 = scmp.eq.s32.totalorder %s16, 0
      %p50 = por %p48, %p49
      %p51 = scmp.ne.s32.totalorder %s40, %s43
      %p52 = scmp.eq.s32.totalorder %s21, 1
      %p53 = por %p51, %p52
      %p54 = scmp.ne.s32.totalorder %s43, %s44
      %p55 = scmp.eq.s32.totalorder %s21, 0
      %p56 = por %p54, %p55
      %p57 = scmp.ne.s32.totalorder %s43, %s44
      %p58 = scmp.eq.s32.totalorder %s22, 1
      %p59 = por %p57, %p58
      %p61 = scmp.ne.s32.totalorder %s44, %s60
      %p62 = scmp.eq.s32.totalorder %s22, 0
      %p63 = por %p61, %p62
      %s65 = sadd.s32 %s64, 1
      %p68 = scmp.eq.s32.totalorder %s16, 1
      %p69 = scmp.ne.s32.totalorder %s64, %s66
      %p70 = scmp.eq.s32.totalorder %s16, 0
      %p71 = por %p69, %p70
      %p72 = scmp.ne.s32.totalorder %s64, %s66
      %p73 = scmp.eq.s32.totalorder %s21, 1
      %p74 = por %p72, %p73
      %p75 = scmp.ne.s32.totalorder %s66, %s67
      %p76 = scmp.eq.s32.totalorder %s21, 0
      %p77 = por %p75, %p76
      %p78 = scmp.ne.s32.totalorder %s66, %s67
      %p79 = scmp.eq.s32.totalorder %s22, 1
      %p80 = por %p78, %p79
      %p82 = scmp.ne.s32.totalorder %s67, %s81
      %p83 = scmp.eq.s32.totalorder %s22, 0
      %p84 = por %p82, %p83
      %s86 = sadd.s32 %s85, 1
      %p89 = scmp.eq.s32.totalorder %s16, 1
      %p90 = scmp.ne.s32.totalorder %s85, %s87
      %p91 = scmp.eq.s32.totalorder %s16, 0
      %p92 = por %p90, %p91
      %p93 = scmp.ne.s32.totalorder %s85, %s87
      %p94 = scmp.eq.s32.totalorder %s21, 1
      %p95 = por %p93, %p94
      %p96 = scmp.ne.s32.totalorder %s87, %s88
      %p97 = scmp.eq.s32.totalorder %s21, 0
      %p98 = por %p96, %p97
      %p99 = scmp.ne.s32.totalorder %s87, %s88
      %p100 = scmp.eq.s32.totalorder %s22, 1
      %p101 = por %p99, %p100
      %p103 = scmp.ne.s32.totalorder %s88, %s102
      %p104 = scmp.eq.s32.totalorder %s22, 0
      %p105 = por %p103, %p104
      %s106 = ssub.s32 %s23, %s35
      %s107 = ssub.s32 %s24, %s31
      %s108 = sor.u32 %s106, %s107
      %p109 = scmp.eq.s32.totalorder %s108, 0
      %s111 = sadd.s32 %s110, 1
      %s112 = scalar_select %p109, %s110, %s111
      %p115 = pneg %p109
      %p116 = scmp.eq.s32.totalorder %s16, 1
      %p117 = por %p115, %p116
      %p118 = scmp.ne.s32.totalorder %s110, %s113
      %p119 = scmp.eq.s32.totalorder %s16, 0
      %p120 = por %p118, %p119
      %p121 = scmp.ne.s32.totalorder %s110, %s113
      %p122 = scmp.eq.s32.totalorder %s21, 1
      %p123 = por %p121, %p122
      %p124 = scmp.ne.s32.totalorder %s113, %s114
      %p125 = scmp.eq.s32.totalorder %s21, 0
      %p126 = por %p124, %p125
      %p127 = scmp.ne.s32.totalorder %s113, %s114
      %p128 = scmp.eq.s32.totalorder %s22, 1
      %p129 = por %p127, %p128
      %p131 = scmp.ne.s32.totalorder %s114, %s130
      %p132 = scmp.eq.s32.totalorder %s22, 0
      %p133 = por %p131, %p132
      %p134 = scmp.le.s32.totalorder 1, %s16
      %p135 = scmp.lt.s32.totalorder %s16, 3
      %p136 = pnand %p134, %p135
      %p137 = pneg %p136
      // Predicated region
      $region9: #{tpu_custom_call.1} parent=5 // pred_check
        _
      $region10: #{tpu_custom_call.1} parent=5 // pred_check_branch
        %139 = sbr.rel (%p136) target = $region12
      $region11: #{tpu_custom_call.1} parent=5 // pred_region
        %s140 = ssub.s32 %s16, 1
        // Predicated region
        $region13: #{tpu_custom_call.1} parent=11 // pred_check
          %p141 = pneg %p77
        $region14: #{tpu_custom_call.1} parent=11 // pred_check_branch
          %143 = sbr.rel (%p141) target = $region16
        $region15: #{tpu_custom_call.1} parent=11 // pred_region
          %s145 = ssub.s32 256, 256
          %146 = vsyncadd [#allocation6], %s145
          %s147 = sshll.u32 [#allocation5], 4
          %s148 = int_to_ptr.vmem [resolvable:$true] %s147
          %153 = dma.hbm_to_vmem [thread:$0]  %s1, 256, %s148, [#allocation6], 64, 64, 4
        $region16: #{tpu_custom_call.1} parent=11 // pred_fallthru
          _
        // Predicated region
        $region17: #{tpu_custom_call.1} parent=11 // pred_check
          %p154 = pneg %p98
        $region18: #{tpu_custom_call.1} parent=11 // pred_check_branch
          %156 = sbr.rel (%p154) target = $region20
        $region19: #{tpu_custom_call.1} parent=11 // pred_region
          _
        $region20: #{tpu_custom_call.1} parent=11 // pred_fallthru
          _
      $region12: #{tpu_custom_call.1} parent=5 // pred_fallthru
        _
      %p157 = scmp.lt.s32.totalorder %s16, 2
      // Predicated region
      $region21: #{tpu_custom_call.1} parent=5 // pred_check
        %p158 = pneg %p157
      $region22: #{tpu_custom_call.1} parent=5 // pred_check_branch
        %160 = sbr.rel (%p158) target = $region24
      $region23: #{tpu_custom_call.1} parent=5 // pred_region
        // Predicated region
        $region25: #{tpu_custom_call.1} parent=23 // pred_check
          %p161 = pneg %p50
        $region26: #{tpu_custom_call.1} parent=23 // pred_check_branch
          %163 = sbr.rel (%p161) target = $region28
        $region27: #{tpu_custom_call.1} parent=23 // pred_region
          %s164 = sand.u32 %s40, 1
          %s165 = scalar_lea.sflag [#allocation3], %s164
          %s166 = sand.u32 %s40, 1
          %s167 = smul.addr %s166, 16
          %s168 = scalar_lea.vmem [#allocation2], %s167
          %s170 = ssub.s32 256, 256
          %171 = vsyncadd %s165, %s170
          %s172 = smul.addr %s23, 4
          %s173 = sadd.s32 %s24, %s172
          %s174 = smul.addr %s173, 64
          %s175 = scalar_lea.hbm %s0, %s174
          %s176 = sshll.u32 %s168, 4
          %s177 = int_to_ptr.vmem [resolvable:$true] %s176
          %182 = dma.hbm_to_vmem [thread:$0]  %s175, 256, %s177, %s165, 64, 64, 4
        $region28: #{tpu_custom_call.1} parent=23 // pred_fallthru
          _
      $region24: #{tpu_custom_call.1} parent=5 // pred_fallthru
        _
      %p183 = scmp.le.s32.totalorder 1, %s16
      %p184 = scmp.lt.s32.totalorder %s16, 3
      %p185 = pnand %p183, %p184
      %p186 = pneg %p185
      // Predicated region
      $region29: #{tpu_custom_call.1} parent=5 // pred_check
        _
      $region30: #{tpu_custom_call.1} parent=5 // pred_check_branch
        %188 = sbr.rel (%p185) target = $region32
      $region31: #{tpu_custom_call.1} parent=5 // pred_region
        %s189 = ssub.s32 %s16, 1
        %s190 = sand.u32 %s43, 1
        %s191 = scalar_lea.sflag [#allocation3], %s190
        %s192 = sand.u32 %s43, 1
        %s193 = smul.addr %s192, 16
        %s194 = scalar_lea.vmem [#allocation2], %s193
        // Predicated region
        $region33: #{tpu_custom_call.1} parent=31 // pred_check
          %p195 = pneg %p56
        $region34: #{tpu_custom_call.1} parent=31 // pred_check_branch
          %197 = sbr.rel (%p195) target = $region36
        $region35: #{tpu_custom_call.1} parent=31 // pred_region
          %198 = dma.done %s191, 256
        $region36: #{tpu_custom_call.1} parent=31 // pred_fallthru
          _
        // Predicated region
        $region37: #{tpu_custom_call.1} parent=31 // pred_check
          %p199 = pneg %p77
        $region38: #{tpu_custom_call.1} parent=31 // pred_check_branch
          %201 = sbr.rel (%p199) target = $region40
        $region39: #{tpu_custom_call.1} parent=31 // pred_region
          %202 = dma.done [#allocation6], 256
        $region40: #{tpu_custom_call.1} parent=31 // pred_fallthru
          _
        %s203 = sand.u32 %s43, 1
        %s204 = scalar_lea.sflag [#allocation3], %s203
        %s205 = sand.u32 %s43, 1
        %s206 = smul.addr %s205, 16
        %s207 = scalar_lea.vmem [#allocation2], %s206
        %p208 = pneg %p56
        %p209 = pneg %p53
        %p210 = pneg %p77
        %p211 = pneg %p74
        %p212 = pneg %p98
        %p213 = pneg %p95
        %p214 = pneg %p126
        %p215 = pneg %p123
        %s216 = sand.u32 %s113, 1
        %s217 = scalar_lea.sflag [#allocation4], %s216
        %s218 = sand.u32 %s113, 1
        %s219 = smul.addr %s218, 4
        %s220 = scalar_lea.vmem [#allocation7], %s219
        %v221 = vld [vmem:[%s194] sm:$0xf]
        %v222 = vld [vmem:[#allocation5] sm:$0xf]
        %s223 = scalar_lea.vmem %s194, 4 [#allocation2]
        %v224 = vld [vmem:[%s223] sm:$0xf]
        %s225 = scalar_lea.vmem [#allocation5], 4
        %v226 = vld [vmem:[%s225] sm:$0xf]
        %vm227 = vcmask 31744
        %v229 = vsel %vm227, %v224, 0
        %vm231 = vcmask 1043456
        %v233 = vsel %vm231, %v226, 0
        %235 = vmatprep.subr.mxu0 0.0
        %236 = vmatpush1.msra.mxu0 0.0
        %237 = vmatprep.subr.mxu0 0.0
        %238 = vmatpush1.msra.mxu0 0.0
        %239 = vmatprep.subr.mxu0 0.0
        %240 = vmatpush1.msra.mxu0 0.0
        %241 = vmatprep.subr.mxu0 0.0
        %242 = vmatpush1.msra.mxu0 0.0
        %243 = vmatprep.subr.mxu0 0.0
        %244 = vmatpush1.msra.mxu0 0.0
        %245 = vmatprep.subr.mxu0 0.0
        %246 = vmatpush1.msra.mxu0 0.0
        %247 = vmatprep.subr.mxu0 0.0
        %248 = vmatpush1.msra.mxu0 0.0
        %249 = vmatprep.subr.mxu0 0.0
        %250 = vmatpush1.msra.mxu0 0.0
        %251 = vmatprep.subr.mxu0 0.0
        %252 = vmatpush1.msra.mxu0 0.0
        %253 = vmatprep.subr.mxu0 0.0
        %254 = vmatpush1.msra.mxu0 0.0
        %255 = vmatprep.subr.mxu0 0.0
        %256 = vmatpush1.msra.mxu0 0.0
        %257 = vmatprep.subr.mxu0 0.0
        %258 = vmatpush1.msra.mxu0 0.0
        %259 = vmatprep.subr.mxu0 0.0
        %260 = vmatpush1.msra.mxu0 0.0
        %261 = vmatprep.subr.mxu0 0.0
        %262 = vmatpush1.msra.mxu0 0.0
        %263 = vmatprep.subr.mxu0 0.0
        %264 = vmatpush1.msra.mxu0 0.0
        %265 = vmatprep.subr.mxu0 0.0
        %266 = vmatpush1.msra.mxu0 %v233
        %267 = vmatprep.subr.mxu0 0.0
        %268 = vmatpush2.msra.mxu0 0.0
        %269 = vmatprep.subr.mxu0 0.0
        %270 = vmatpush2.msra.mxu0 0.0
        %271 = vmatprep.subr.mxu0 0.0
        %272 = vmatpush2.msra.mxu0 0.0
        %273 = vmatprep.subr.mxu0 0.0
        %274 = vmatpush2.msra.mxu0 0.0
        %275 = vmatprep.subr.mxu0 0.0
        %276 = vmatpush2.msra.mxu0 0.0
        %277 = vmatprep.subr.mxu0 0.0
        %278 = vmatpush2.msra.mxu0 0.0
        %279 = vmatprep.subr.mxu0 0.0
        %280 = vmatpush2.msra.mxu0 0.0
        %281 = vmatprep.subr.mxu0 0.0
        %282 = vmatpush2.msra.mxu0 0.0
        %283 = vmatprep.subr.mxu0 0.0
        %284 = vmatpush2.msra.mxu0 0.0
        %285 = vmatprep.subr.mxu0 0.0
        %286 = vmatpush2.msra.mxu0 0.0
        %287 = vmatprep.subr.mxu0 0.0
        %288 = vmatpush2.msra.mxu0 0.0
        %289 = vmatprep.subr.mxu0 0.0
        %290 = vmatpush2.msra.mxu0 0.0
        %291 = vmatprep.subr.mxu0 0.0
        %292 = vmatpush2.msra.mxu0 0.0
        %293 = vmatprep.subr.mxu0 0.0
        %294 = vmatpush2.msra.mxu0 0.0
        %295 = vmatprep.subr.mxu0 0.0
        %296 = vmatpush2.msra.mxu0 0.0
        %297 = vmatprep.subr.mxu0 0.0
        %298 = vmatpush2.msra.mxu0 0.0
        %299 = vmatprep.mubr.f32.mxu0 0.0
        %300 = vmatmul.mubr.f32.gmra.mxu0 %v229
        %v301 = vpop.f32.mrf.mxu0
        %v302 = vadd.f32 0.0, %v301
        %v303 = vpop.f32.mrf.mxu0
        %304 = vdwg.mxu0
        %v306 = vsel %vm227, %v221, 0
        %v309 = vsel %vm231, %v222, 0
        %311 = vmatprep.subr.mxu0 0.0
        %312 = vmatpush1.msra.mxu0 0.0
        %313 = vmatprep.subr.mxu0 0.0
        %314 = vmatpush1.msra.mxu0 0.0
        %315 = vmatprep.subr.mxu0 0.0
        %316 = vmatpush1.msra.mxu0 0.0
        %317 = vmatprep.subr.mxu0 0.0
        %318 = vmatpush1.msra.mxu0 0.0
        %319 = vmatprep.subr.mxu0 0.0
        %320 = vmatpush1.msra.mxu0 0.0
        %321 = vmatprep.subr.mxu0 0.0
        %322 = vmatpush1.msra.mxu0 0.0
        %323 = vmatprep.subr.mxu0 0.0
        %324 = vmatpush1.msra.mxu0 0.0
        %325 = vmatprep.subr.mxu0 0.0
        %326 = vmatpush1.msra.mxu0 0.0
        %327 = vmatprep.subr.mxu0 0.0
        %328 = vmatpush1.msra.mxu0 0.0
        %329 = vmatprep.subr.mxu0 0.0
        %330 = vmatpush1.msra.mxu0 0.0
        %331 = vmatprep.subr.mxu0 0.0
        %332 = vmatpush1.msra.mxu0 0.0
        %333 = vmatprep.subr.mxu0 0.0
        %334 = vmatpush1.msra.mxu0 0.0
        %335 = vmatprep.subr.mxu0 0.0
        %336 = vmatpush1.msra.mxu0 0.0
        %337 = vmatprep.subr.mxu0 0.0
        %338 = vmatpush1.msra.mxu0 0.0
        %339 = vmatprep.subr.mxu0 0.0
        %340 = vmatpush1.msra.mxu0 0.0
        %341 = vmatprep.subr.mxu0 0.0
        %342 = vmatpush1.msra.mxu0 %v309
        %343 = vmatprep.subr.mxu0 0.0
        %344 = vmatpush2.msra.mxu0 0.0
        %345 = vmatprep.subr.mxu0 0.0
        %346 = vmatpush2.msra.mxu0 0.0
        %347 = vmatprep.subr.mxu0 0.0
        %348 = vmatpush2.msra.mxu0 0.0
        %349 = vmatprep.subr.mxu0 0.0
        %350 = vmatpush2.msra.mxu0 0.0
        %351 = vmatprep.subr.mxu0 0.0
        %352 = vmatpush2.msra.mxu0 0.0
        %353 = vmatprep.subr.mxu0 0.0
        %354 = vmatpush2.msra.mxu0 0.0
        %355 = vmatprep.subr.mxu0 0.0
        %356 = vmatpush2.msra.mxu0 0.0
        %357 = vmatprep.subr.mxu0 0.0
        %358 = vmatpush2.msra.mxu0 0.0
        %359 = vmatprep.subr.mxu0 0.0
        %360 = vmatpush2.msra.mxu0 0.0
        %361 = vmatprep.subr.mxu0 0.0
        %362 = vmatpush2.msra.mxu0 0.0
        %363 = vmatprep.subr.mxu0 0.0
        %364 = vmatpush2.msra.mxu0 0.0
        %365 = vmatprep.subr.mxu0 0.0
        %366 = vmatpush2.msra.mxu0 0.0
        %367 = vmatprep.subr.mxu0 0.0
        %368 = vmatpush2.msra.mxu0 0.0
        %369 = vmatprep.subr.mxu0 0.0
        %370 = vmatpush2.msra.mxu0 0.0
        %371 = vmatprep.subr.mxu0 0.0
        %372 = vmatpush2.msra.mxu0 0.0
        %373 = vmatprep.subr.mxu0 0.0
        %374 = vmatpush2.msra.mxu0 0.0
        %375 = vmatprep.mubr.f32.mxu0 0.0
        %376 = vmatmul.mubr.f32.gmra.mxu0 %v306
        %v377 = vpop.f32.mrf.mxu0
        %v378 = vadd.f32 %v302, %v377
        %v379 = vpop.f32.mrf.mxu0
        %380 = vdwg.mxu0
        %s381 = scalar_lea.vmem %s194, 8 [#allocation2]
        %v382 = vld [vmem:[%s381] sm:$0xf]
        %s383 = scalar_lea.vmem [#allocation5], 8
        %v384 = vld [vmem:[%s383] sm:$0xf]
        %v386 = vsel %vm227, %v382, 0
        %v389 = vsel %vm231, %v384, 0
        %391 = vmatprep.subr.mxu0 0.0
        %392 = vmatpush1.msra.mxu0 0.0
        %393 = vmatprep.subr.mxu0 0.0
        %394 = vmatpush1.msra.mxu0 0.0
        %395 = vmatprep.subr.mxu0 0.0
        %396 = vmatpush1.msra.mxu0 0.0
        %397 = vmatprep.subr.mxu0 0.0
        %398 = vmatpush1.msra.mxu0 0.0
        %399 = vmatprep.subr.mxu0 0.0
        %400 = vmatpush1.msra.mxu0 0.0
        %401 = vmatprep.subr.mxu0 0.0
        %402 = vmatpush1.msra.mxu0 0.0
        %403 = vmatprep.subr.mxu0 0.0
        %404 = vmatpush1.msra.mxu0 0.0
        %405 = vmatprep.subr.mxu0 0.0
        %406 = vmatpush1.msra.mxu0 0.0
        %407 = vmatprep.subr.mxu0 0.0
        %408 = vmatpush1.msra.mxu0 0.0
        %409 = vmatprep.subr.mxu0 0.0
        %410 = vmatpush1.msra.mxu0 0.0
        %411 = vmatprep.subr.mxu0 0.0
        %412 = vmatpush1.msra.mxu0 0.0
        %413 = vmatprep.subr.mxu0 0.0
        %414 = vmatpush1.msra.mxu0 0.0
        %415 = vmatprep.subr.mxu0 0.0
        %416 = vmatpush1.msra.mxu0 0.0
        %417 = vmatprep.subr.mxu0 0.0
        %418 = vmatpush1.msra.mxu0 0.0
        %419 = vmatprep.subr.mxu0 0.0
        %420 = vmatpush1.msra.mxu0 0.0
        %421 = vmatprep.subr.mxu0 0.0
        %422 = vmatpush1.msra.mxu0 %v389
        %423 = vmatprep.subr.mxu0 0.0
        %424 = vmatpush2.msra.mxu0 0.0
        %425 = vmatprep.subr.mxu0 0.0
        %426 = vmatpush2.msra.mxu0 0.0
        %427 = vmatprep.subr.mxu0 0.0
        %428 = vmatpush2.msra.mxu0 0.0
        %429 = vmatprep.subr.mxu0 0.0
        %430 = vmatpush2.msra.mxu0 0.0
        %431 = vmatprep.subr.mxu0 0.0
        %432 = vmatpush2.msra.mxu0 0.0
        %433 = vmatprep.subr.mxu0 0.0
        %434 = vmatpush2.msra.mxu0 0.0
        %435 = vmatprep.subr.mxu0 0.0
        %436 = vmatpush2.msra.mxu0 0.0
        %437 = vmatprep.subr.mxu0 0.0
        %438 = vmatpush2.msra.mxu0 0.0
        %439 = vmatprep.subr.mxu0 0.0
        %440 = vmatpush2.msra.mxu0 0.0
        %441 = vmatprep.subr.mxu0 0.0
        %442 = vmatpush2.msra.mxu0 0.0
        %443 = vmatprep.subr.mxu0 0.0
        %444 = vmatpush2.msra.mxu0 0.0
        %445 = vmatprep.subr.mxu0 0.0
        %446 = vmatpush2.msra.mxu0 0.0
        %447 = vmatprep.subr.mxu0 0.0
        %448 = vmatpush2.msra.mxu0 0.0
        %449 = vmatprep.subr.mxu0 0.0
        %450 = vmatpush2.msra.mxu0 0.0
        %451 = vmatprep.subr.mxu0 0.0
        %452 = vmatpush2.msra.mxu0 0.0
        %453 = vmatprep.subr.mxu0 0.0
        %454 = vmatpush2.msra.mxu0 0.0
        %455 = vmatprep.mubr.f32.mxu0 0.0
        %456 = vmatmul.mubr.f32.gmra.mxu0 %v386
        %v457 = vpop.f32.mrf.mxu0
        %v458 = vadd.f32 0.0, %v457
        %v459 = vpop.f32.mrf.mxu0
        %460 = vdwg.mxu0
        %v461 = vadd.f32 %v378, %v458
        %s462 = scalar_lea.vmem %s194, 12 [#allocation2]
        %v463 = vld [vmem:[%s462] sm:$0xf]
        %s464 = scalar_lea.vmem [#allocation5], 12
        %v465 = vld [vmem:[%s464] sm:$0xf]
        %v467 = vsel %vm227, %v463, 0
        %v470 = vsel %vm231, %v465, 0
        %472 = vmatprep.subr.mxu0 0.0
        %473 = vmatpush1.msra.mxu0 0.0
        %474 = vmatprep.subr.mxu0 0.0
        %475 = vmatpush1.msra.mxu0 0.0
        %476 = vmatprep.subr.mxu0 0.0
        %477 = vmatpush1.msra.mxu0 0.0
        %478 = vmatprep.subr.mxu0 0.0
        %479 = vmatpush1.msra.mxu0 0.0
        %480 = vmatprep.subr.mxu0 0.0
        %481 = vmatpush1.msra.mxu0 0.0
        %482 = vmatprep.subr.mxu0 0.0
        %483 = vmatpush1.msra.mxu0 0.0
        %484 = vmatprep.subr.mxu0 0.0
        %485 = vmatpush1.msra.mxu0 0.0
        %486 = vmatprep.subr.mxu0 0.0
        %487 = vmatpush1.msra.mxu0 0.0
        %488 = vmatprep.subr.mxu0 0.0
        %489 = vmatpush1.msra.mxu0 0.0
        %490 = vmatprep.subr.mxu0 0.0
        %491 = vmatpush1.msra.mxu0 0.0
        %492 = vmatprep.subr.mxu0 0.0
        %493 = vmatpush1.msra.mxu0 0.0
        %494 = vmatprep.subr.mxu0 0.0
        %495 = vmatpush1.msra.mxu0 0.0
        %496 = vmatprep.subr.mxu0 0.0
        %497 = vmatpush1.msra.mxu0 0.0
        %498 = vmatprep.subr.mxu0 0.0
        %499 = vmatpush1.msra.mxu0 0.0
        %500 = vmatprep.subr.mxu0 0.0
        %501 = vmatpush1.msra.mxu0 0.0
        %502 = vmatprep.subr.mxu0 0.0
        %503 = vmatpush1.msra.mxu0 %v470
        %504 = vmatprep.subr.mxu0 0.0
        %505 = vmatpush2.msra.mxu0 0.0
        %506 = vmatprep.subr.mxu0 0.0
        %507 = vmatpush2.msra.mxu0 0.0
        %508 = vmatprep.subr.mxu0 0.0
        %509 = vmatpush2.msra.mxu0 0.0
        %510 = vmatprep.subr.mxu0 0.0
        %511 = vmatpush2.msra.mxu0 0.0
        %512 = vmatprep.subr.mxu0 0.0
        %513 = vmatpush2.msra.mxu0 0.0
        %514 = vmatprep.subr.mxu0 0.0
        %515 = vmatpush2.msra.mxu0 0.0
        %516 = vmatprep.subr.mxu0 0.0
        %517 = vmatpush2.msra.mxu0 0.0
        %518 = vmatprep.subr.mxu0 0.0
        %519 = vmatpush2.msra.mxu0 0.0
        %520 = vmatprep.subr.mxu0 0.0
        %521 = vmatpush2.msra.mxu0 0.0
        %522 = vmatprep.subr.mxu0 0.0
        %523 = vmatpush2.msra.mxu0 0.0
        %524 = vmatprep.subr.mxu0 0.0
        %525 = vmatpush2.msra.mxu0 0.0
        %526 = vmatprep.subr.mxu0 0.0
        %527 = vmatpush2.msra.mxu0 0.0
        %528 = vmatprep.subr.mxu0 0.0
        %529 = vmatpush2.msra.mxu0 0.0
        %530 = vmatprep.subr.mxu0 0.0
        %531 = vmatpush2.msra.mxu0 0.0
        %532 = vmatprep.subr.mxu0 0.0
        %533 = vmatpush2.msra.mxu0 0.0
        %534 = vmatprep.subr.mxu0 0.0
        %535 = vmatpush2.msra.mxu0 0.0
        %536 = vmatprep.mubr.f32.mxu0 0.0
        %537 = vmatmul.mubr.f32.gmra.mxu0 %v467
        %v538 = vpop.f32.mrf.mxu0
        %v539 = vadd.f32 0.0, %v538
        %v540 = vpop.f32.mrf.mxu0
        %541 = vdwg.mxu0
        %v542 = vadd.f32 %v461, %v539
        %v543 = vld [vmem:[%s2] sm:$0x1]
        %v545 = vlaneseq
        %v546 = vshrl.u32 %v545, 7
        %v547 = vsub.s32 0, %v546
        %v548 = vrot.slane %v543, %v547
        %v550 = vadd.f32 %v542, %v548
        %vm551 = vcmask 257024
        %552 = vst.msk [vmem:[%s220] sm:$0xf] %vm551, %v550
        %s553 = sand.u32 %s113, 1
        %s554 = scalar_lea.sflag [#allocation4], %s553
        %s555 = sand.u32 %s113, 1
        %s556 = smul.addr %s555, 4
        %s557 = scalar_lea.vmem [#allocation7], %s556
        // Predicated region
        $region41: #{tpu_custom_call.1} parent=31 // pred_check
          %p558 = pneg %p123
        $region42: #{tpu_custom_call.1} parent=31 // pred_check_branch
          %560 = sbr.rel (%p558) target = $region44
        $region43: #{tpu_custom_call.1} parent=31 // pred_region
          %s562 = ssub.s32 64, 64
          %563 = vsyncadd %s554, %s562
          %s564 = sadd.s32 %s26, %s25
          %s565 = smul.addr %s564, 64
          %s566 = scalar_lea.hbm %s3, %s565
          %s568 = sshll.u32 %s557, 4
          %s569 = int_to_ptr.vmem [resolvable:$true] %s568
          %571 = dma.vmem_to_hbm [thread:$0]  %s569, 64, %s566, %s554
        $region44: #{tpu_custom_call.1} parent=31 // pred_fallthru
          _
      $region32: #{tpu_custom_call.1} parent=5 // pred_fallthru
        _
      %p572 = scmp.le.s32.totalorder 2, %s16
      // Predicated region
      $region45: #{tpu_custom_call.1} parent=5 // pred_check
        %p573 = pneg %p572
      $region46: #{tpu_custom_call.1} parent=5 // pred_check_branch
        %575 = sbr.rel (%p573) target = $region48
      $region47: #{tpu_custom_call.1} parent=5 // pred_region
        %s576 = ssub.s32 %s16, 2
        // Predicated region
        $region49: #{tpu_custom_call.1} parent=47 // pred_check
          %p577 = pneg %p129
        $region50: #{tpu_custom_call.1} parent=47 // pred_check_branch
          %579 = sbr.rel (%p577) target = $region52
        $region51: #{tpu_custom_call.1} parent=47 // pred_region
          %s580 = sand.u32 %s114, 1
          %s581 = scalar_lea.sflag [#allocation4], %s580
          %s582 = sand.u32 %s114, 1
          %s583 = smul.addr %s582, 4
          %s584 = scalar_lea.vmem [#allocation7], %s583
          %585 = dma.done %s581, 64
        $region52: #{tpu_custom_call.1} parent=47 // pred_fallthru
          _
      $region48: #{tpu_custom_call.1} parent=5 // pred_fallthru
        _
    $region6: #{tpu_custom_call.1} parent=1 // loop_footer
      %s20 = sadd.s32 1, %s16
    $region7: #{tpu_custom_call.1} parent=1 // loop_footer_branch
      %15 = sbr.rel target = $region3
    $region8: #{tpu_custom_call.1} parent=1 // loop_exit
      _
    %586 = vsyncpa [#allocation3], 1
    %s587 = scalar_lea.sflag [#allocation3], 1
    %588 = vsyncpa %s587, 1
    %589 = vsyncpa [#allocation6], 1
    %590 = vsyncpa [#allocation4], 1
    %s591 = scalar_lea.sflag [#allocation4], 1
    %592 = vsyncpa %s591, 1

</llo_original>
